<compile_context>
chip_gen: v5e
topology: v5e:2x2
jax: 0.10.0
libtpu: 0.0.40
codegen_flags: <defaults>
</compile_context>

<pallas_src>
import functools

import jax
import jax.numpy as jnp
from jax.experimental import pallas as pl
from jax.experimental.pallas import tpu as pltpu


def _round_up(x, m):
    return (x + m - 1) // m * m


# ---------------------------------------------------------------------------
# Stage 1 (runs once, grid=(1,)): batch-invariant projections, logits and the
# shared softmax numerators.  Nothing here depends on the mask batch index.
# ---------------------------------------------------------------------------
def _proj_logits_exp_kernel(xt_ref, xd_ref,          # (L, H)       compute dtype
                            xtT_ref, xdT_ref,        # (H, L)       compute dtype
                            wqv_t_ref, wqv_d_ref,    # (H, 2*H_pad) compute dtype
                            wkT_t_ref, wkT_d_ref,    # (H_pad, H)   compute dtype
                            e_t_ref, e_d_ref,        # (L, L)       compute dtype
                            v_t_ref, v_d_ref,        # (L, H_pad)   compute dtype
                            *, hidden_dim, use_ones_col):
    L, _ = xt_ref.shape
    H_pad = v_t_ref.shape[1]
    cdt = xt_ref.dtype

    # Fused Q|V projections: one MXU matmul per stream, f32 accumulation.
    proj_t = jnp.dot(xt_ref[...], wqv_t_ref[...], preferred_element_type=jnp.float32)
    proj_d = jnp.dot(xd_ref[...], wqv_d_ref[...], preferred_element_type=jnp.float32)
    q_t, v_t = proj_t[:, :H_pad], proj_t[:, H_pad:]
    q_d, v_d = proj_d[:, :H_pad], proj_d[:, H_pad:]

    # K^T produced directly in (H_pad, L) layout: Wk^T @ x^T (no XLU transpose).
    kT_t = jnp.dot(wkT_t_ref[...], xtT_ref[...], preferred_element_type=jnp.float32)
    kT_d = jnp.dot(wkT_d_ref[...], xdT_ref[...], preferred_element_type=jnp.float32)

    # Logits with the native (last, first) contraction; zero padding is exact.
    alpha_t = jnp.dot(q_d.astype(cdt), kT_t.astype(cdt), preferred_element_type=jnp.float32)
    alpha_d = jnp.dot(q_t.astype(cdt), kT_d.astype(cdt), preferred_element_type=jnp.float32)

    # Shared (batch-invariant) softmax numerators.  Softmax is shift-invariant,
    # so subtracting the UNMASKED row max is exact for every batch row; masked
    # columns are zeroed later by a select and never see an exp.
    e_t = jnp.exp(alpha_t - jnp.max(alpha_t, axis=1, keepdims=True))
    e_d = jnp.exp(alpha_d - jnp.max(alpha_d, axis=1, keepdims=True))
    e_t_ref[...] = e_t.astype(cdt)
    e_d_ref[...] = e_d.astype(cdt)

    if use_ones_col:
        # 1.0 in V's first zero-padding column (index H): the stage-2 PV matmul
        # then yields the softmax denominator for free on the MXU.
        col = jax.lax.broadcasted_iota(jnp.int32, (L, H_pad), 1)
        v_t = jnp.where(col == hidden_dim, 1.0, v_t)
        v_d = jnp.where(col == hidden_dim, 1.0, v_d)
    v_t_ref[...] = v_t.astype(cdt)
    v_d_ref[...] = v_d.astype(cdt)


# ---------------------------------------------------------------------------
# Stage 2 (batch-tiled grid): mask-select, PV matmul, normalisation.
# ---------------------------------------------------------------------------
def _masked_pv_kernel(lens_ref,                      # (Tb, 1) int32   VMEM block
                      e_t_ref, e_d_ref,              # (L, L)          compute dtype
                      v_t_ref, v_d_ref,              # (L, H_pad)      compute dtype
                      out_t_ref, out_d_ref,          # (Tb, L, H_pad)  out dtype
                      *, hidden_dim, use_ones_col, approx_recip):
    Tb, L, H_pad = out_t_ref.shape
    cdt = e_t_ref.dtype

    lens_col = lens_ref[...]                                   # (Tb, 1) int32
    col = jax.lax.broadcasted_iota(jnp.int32, (Tb, L), 1)
    keep = (col < lens_col)[:, None, :]                        # (Tb, 1, L)
    empty = (lens_col == 0)[:, None, :]                        # (Tb, 1, 1)
    zero = jnp.zeros((), cdt)
    one = jnp.ones((), cdt)

    def one_stream(e_ref, v_ref, out_ref):
        # Mask as selects on the already-cast shared numerators (no exp here).
        e = jnp.broadcast_to(e_ref[...][None], (Tb, L, L))
        e = jnp.where(keep, e, zero)
        e = jnp.where(empty, one, e)      # lens==0 -> uniform row (PyTorch parity)
        # One lane-dense MXU matmul with weight-stationary V; its ones column
        # produces the softmax denominator without an XLU reduction.
        un = jnp.dot(e.reshape(Tb * L, L), v_ref[...],
                     preferred_element_type=jnp.float32).reshape(Tb, L, H_pad)
        if use_ones_col:
            s = un[..., hidden_dim:hidden_dim + 1]             # (Tb, L, 1)
        else:
            s = jnp.sum(e.astype(jnp.float32), axis=2, keepdims=True)
        s = jnp.maximum(s, jnp.float32(1e-30))                 # underflow guard
        inv = pl.reciprocal(s, approx=True) if approx_recip else 1.0 / s
        out_ref[...] = (un * inv).astype(out_ref.dtype)

    one_stream(e_t_ref, v_t_ref, out_t_ref)
    one_stream(e_d_ref, v_d_ref, out_d_ref)


# ---------------------------------------------------------------------------
# Wrapper
# ---------------------------------------------------------------------------
def _vmem_budget_bytes():
    try:
        cap = int(pltpu.get_tpu_info().vmem_capacity_bytes)    # 64 MiB/TC v7x, 128 MiB v5e/v6e
    except Exception:
        cap = 64 * 2 ** 20
    return max(16 * 2 ** 20, (cap * 3) // 4)                   # leave headroom


def _choose_block_b(b_pad, L, h_pad, cdt_bytes, out_bytes, budget):
    """Largest batch tile (multiple of 8, or the whole batch) whose per-step
    working set fits the generation's VMEM budget."""
    def working_set(tb):
        e_live = 2 * tb * L * L * cdt_bytes            # masked (Tb,L,L) tiles, 2 streams
        pv_live = 2 * tb * L * h_pad * 4               # f32 PV results
        outs = 2 * 2 * tb * L * h_pad * out_bytes      # double-buffered output blocks
        const = 2 * 2 * (L * L + L * h_pad) * cdt_bytes + 2 * tb * 4   # e/v/lens blocks
        return e_live + pv_live + outs + const

    cands = [tb for tb in range(1, b_pad + 1)
             if b_pad % tb == 0 and (tb % 8 == 0 or tb == b_pad)]
    fitting = [tb for tb in cands if working_set(tb) <= budget]
    return max(fitting) if fitting else min(cands)


def cross_attention_layer(inputs_t, inputs_d, lens, params, *,
                          compute_dtype=jnp.bfloat16, out_dtype=None,
                          block_b=None, approx_reciprocal=True):
    """Pallas forward of Cross_Attention_Layer (is_bi_rnn=False).

    inputs_t / inputs_d: (L, H); lens: length-L key lengths with max(lens) == L
    (mirroring the PyTorch module's mask construction).  Returns (out_t, out_d),
    each (L, L, H).
    """
    L, H = inputs_t.shape
    B = L                                            # size[0] in the PyTorch forward
    assert int(max(lens)) == L, "max(lens) must equal the sequence length"
    out_dtype = jnp.dtype(inputs_t.dtype if out_dtype is None else out_dtype)
    cdt = jnp.dtype(compute_dtype)
    H_pad = _round_up(H, 128)                        # lane-dense last dim
    use_ones_col = H < H_pad                         # room for the denominator column

    budget = _vmem_budget_bytes()
    B_pad = _round_up(B, 8)                          # lens block sublane alignment
    if block_b is None:
        Tb = _choose_block_b(B_pad, L, H_pad, cdt.itemsize, out_dtype.itemsize, budget)
    else:
        Tb = block_b
        assert B_pad % Tb == 0 and (Tb % 8 == 0 or Tb == B_pad)

    lens_i32 = jnp.asarray(lens, jnp.int32).reshape(B)
    if B_pad != B:
        lens_i32 = jnp.pad(lens_i32, (0, B_pad - B))  # padded rows -> uniform, sliced off
    lens_i32 = lens_i32.reshape(B_pad, 1)

    xt = inputs_t.astype(cdt)
    xd = inputs_d.astype(cdt)
    xtT = xt.T                                        # transposed once, outside the kernels
    xdT = xd.T

    def _pad_cols(w):
        return jnp.pad(w, ((0, 0), (0, H_pad - w.shape[1])))

    # Packed [Wq | Wv] (H, 2*H_pad); zero-padded sections keep the in-kernel
    # slices and stores lane-aligned and are numerically exact.
    wqv_t = jnp.concatenate([_pad_cols(params['wqt']), _pad_cols(params['wvt'])], 1).astype(cdt)
    wqv_d = jnp.concatenate([_pad_cols(params['wqd']), _pad_cols(params['wvd'])], 1).astype(cdt)
    # K weights pre-transposed to (H_pad, H) so K^T is produced directly.
    wkT_t = jnp.pad(params['wkt'].T, ((0, H_pad - H), (0, 0))).astype(cdt)
    wkT_d = jnp.pad(params['wkd'].T, ((0, H_pad - H), (0, 0))).astype(cdt)

    # ---- stage 1: batch-invariant work, executed exactly once per call ----
    full = lambda i: (0, 0)
    e_t, e_d, v_t, v_d = pl.pallas_call(
        functools.partial(_proj_logits_exp_kernel,
                          hidden_dim=H, use_ones_col=use_ones_col),
        out_shape=(jax.ShapeDtypeStruct((L, L), cdt),
                   jax.ShapeDtypeStruct((L, L), cdt),
                   jax.ShapeDtypeStruct((L, H_pad), cdt),
                   jax.ShapeDtypeStruct((L, H_pad), cdt)),
        grid=(1,),
        in_specs=[pl.BlockSpec((L, H), full), pl.BlockSpec((L, H), full),
                  pl.BlockSpec((H, L), full), pl.BlockSpec((H, L), full),
                  pl.BlockSpec((H, 2 * H_pad), full), pl.BlockSpec((H, 2 * H_pad), full),
                  pl.BlockSpec((H_pad, H), full), pl.BlockSpec((H_pad, H), full)],
        out_specs=(pl.BlockSpec((L, L), full), pl.BlockSpec((L, L), full),
                   pl.BlockSpec((L, H_pad), full), pl.BlockSpec((L, H_pad), full)),
        compiler_params=pltpu.CompilerParams(
            dimension_semantics=("arbitrary",),
            vmem_limit_bytes=budget),
    )(xt, xd, xtT, xdT, wqv_t, wqv_d, wkT_t, wkT_d)

    # ---- stage 2: batch-tiled mask + PV matmul + normalisation ----
    # TODO(synk): pipeline_mode=pl.Buffered(1) on the constant-index e/v inputs
    # would reclaim their second VMEM buffer on v7x (they never change across
    # the grid); left on the conservative default lowering path here.
    const2 = lambda b: (0, 0)
    out_t, out_d = pl.pallas_call(
        functools.partial(_masked_pv_kernel, hidden_dim=H,
                          use_ones_col=use_ones_col,
                          approx_recip=approx_reciprocal),
        out_shape=(jax.ShapeDtypeStruct((B_pad, L, H_pad), out_dtype),
                   jax.ShapeDtypeStruct((B_pad, L, H_pad), out_dtype)),
        grid=(B_pad // Tb,),
        in_specs=[pl.BlockSpec((Tb, 1), lambda b: (b, 0)),
                  pl.BlockSpec((L, L), const2), pl.BlockSpec((L, L), const2),
                  pl.BlockSpec((L, H_pad), const2), pl.BlockSpec((L, H_pad), const2)],
        out_specs=(pl.BlockSpec((Tb, L, H_pad), lambda b: (b, 0, 0)),
                   pl.BlockSpec((Tb, L, H_pad), lambda b: (b, 0, 0))),
        compiler_params=pltpu.CompilerParams(
            dimension_semantics=("parallel",),      # v7x: batch tiles split across the 2 TCs
            vmem_limit_bytes=budget),
    )(lens_i32, e_t, e_d, v_t, v_d)

    if B_pad != B:
        out_t, out_d = out_t[:B], out_d[:B]
    if H_pad != H:                                  # drop the exact zero padding
        out_t, out_d = out_t[..., :H], out_d[..., :H]
    return out_t, out_d


# ---------------------------------------------------------------------------
# Pure-JAX reference of the PyTorch forward + init helpers + test driver
# ---------------------------------------------------------------------------
def reference(inputs_t, inputs_d, lens, params):
    L, H = inputs_t.shape
    B = L
    Q_t = inputs_t @ params['wqt']; K_t = inputs_t @ params['wkt']; V_t = inputs_t @ params['wvt']
    Q_d = inputs_d @ params['wqd']; K_d = inputs_d @ params['wkd']; V_d = inputs_d @ params['wvd']
    alpha_t = Q_d @ K_t.T
    alpha_d = Q_t @ K_d.T
    lens_a = jnp.asarray(lens, jnp.int32)
    mask = (jnp.arange(L)[None, :] < lens_a[:, None])[:, None, :]
    mask = jnp.broadcast_to(mask, (B, L, L))
    neg = jnp.float32(-2.0 ** 31)
    a_t = jnp.where(mask, jnp.broadcast_to(alpha_t[None], (B, L, L)), neg)
    a_d = jnp.where(mask, jnp.broadcast_to(alpha_d[None], (B, L, L)), neg)
    p_t = jax.nn.softmax(a_t, axis=2)
    p_d = jax.nn.softmax(a_d, axis=2)
    out_t = jnp.einsum('blj,jh->blh', p_t, V_t)
    out_d = jnp.einsum('blj,jh->blh', p_d, V_d)
    return out_t, out_d


def init_params(key, hidden_dim):
    """nn.Linear(hidden, hidden, bias=False) init: U(-1/sqrt(in), 1/sqrt(in)).
    Weights stored pre-transposed as (in, out) for the kernels."""
    bound = 1.0 / jnp.sqrt(hidden_dim)
    names = ['wqt', 'wkt', 'wvt', 'wqd', 'wkd', 'wvd']
    keys = jax.random.split(key, len(names))
    return {n: jax.random.uniform(k, (hidden_dim, hidden_dim), jnp.float32,
                                  minval=-bound, maxval=bound)
            for n, k in zip(names, keys)}


if __name__ == "__main__":
    L = 16         # sequence length (= size[0] = mask batch dim)
    H = 32         # hidden_dim
    lens = [16, 5, 3, 9, 1, 12, 7, 16, 2, 14, 6, 11, 4, 8, 15, 10]   # max == L

    key = jax.random.PRNGKey(0)
    k_t, k_d, k_w = jax.random.split(key, 3)
    inputs_t = jax.random.normal(k_t, (L, H), jnp.float32)
    inputs_d = jax.random.normal(k_d, (L, H), jnp.float32)
    params = init_params(k_w, H)

    ref_t, ref_d = reference(inputs_t, inputs_d, lens, params)

    # Strict path: f32 MXU operands, exact 1/s (per review correctness note).
    o_t, o_d = cross_attention_layer(inputs_t, inputs_d, lens, params,
                                     compute_dtype=jnp.float32,
                                     approx_reciprocal=False)
    o_t = jax.block_until_ready(o_t); o_d = jax.block_until_ready(o_d)
    assert o_t.shape == (L, L, H) and o_d.shape == (L, L, H)
    assert jnp.allclose(o_t, ref_t, rtol=1e-2, atol=1e-2)
    assert jnp.allclose(o_d, ref_d, rtol=1e-2, atol=1e-2)

    # Default bf16 MXU operands (v6e/v7x peak-rate path): softmax statistics and
    # matmul accumulation stay in f32, only operand rounding error remains.
    b_t, b_d = cross_attention_layer(inputs_t, inputs_d, lens, params)
    b_t = jax.block_until_ready(b_t); b_d = jax.block_until_ready(b_d)
    assert b_t.shape == (L, L, H) and b_d.shape == (L, L, H)
    assert jnp.allclose(b_t, ref_t, rtol=1e-1, atol=1e-1)
    assert jnp.allclose(b_d, ref_d, rtol=1e-1, atol=1e-1)

    print("KERNEL_OK")
</pallas_src>

<mosaic_0001>
module attributes {stable_mosaic.version = 11 : i64} {
  func.func @_proj_logits_exp_kernel(%arg0: i32, %arg1: memref<16x32xf32, #tpu.memory_space<vmem>>, %arg2: memref<16x32xf32, #tpu.memory_space<vmem>>, %arg3: memref<32x16xf32, #tpu.memory_space<vmem>>, %arg4: memref<32x16xf32, #tpu.memory_space<vmem>>, %arg5: memref<32x256xf32, #tpu.memory_space<vmem>>, %arg6: memref<32x256xf32, #tpu.memory_space<vmem>>, %arg7: memref<128x32xf32, #tpu.memory_space<vmem>>, %arg8: memref<128x32xf32, #tpu.memory_space<vmem>>, %arg9: memref<16x16xf32, #tpu.memory_space<vmem>>, %arg10: memref<16x16xf32, #tpu.memory_space<vmem>>, %arg11: memref<16x128xf32, #tpu.memory_space<vmem>>, %arg12: memref<16x128xf32, #tpu.memory_space<vmem>>) attributes {dimension_semantics = [#tpu.dimension_semantics<arbitrary>], iteration_bounds = array<i64: 1>, scalar_prefetch = 0 : i64, scratch_operands = 0 : i64, tpu.core_type = #tpu.core_type<tc>, window_params = [{pipeline_mode = #tpu.pipeline_mode<synchronous>, transform_indices = @transform_0, window_bounds = array<i64: 16, 32>}, {pipeline_mode = #tpu.pipeline_mode<synchronous>, transform_indices = @transform_1, window_bounds = array<i64: 16, 32>}, {pipeline_mode = #tpu.pipeline_mode<synchronous>, transform_indices = @transform_2, window_bounds = array<i64: 32, 16>}, {pipeline_mode = #tpu.pipeline_mode<synchronous>, transform_indices = @transform_3, window_bounds = array<i64: 32, 16>}, {pipeline_mode = #tpu.pipeline_mode<synchronous>, transform_indices = @transform_4, window_bounds = array<i64: 32, 256>}, {pipeline_mode = #tpu.pipeline_mode<synchronous>, transform_indices = @transform_5, window_bounds = array<i64: 32, 256>}, {pipeline_mode = #tpu.pipeline_mode<synchronous>, transform_indices = @transform_6, window_bounds = array<i64: 128, 32>}, {pipeline_mode = #tpu.pipeline_mode<synchronous>, transform_indices = @transform_7, window_bounds = array<i64: 128, 32>}, {pipeline_mode = #tpu.pipeline_mode<synchronous>, transform_indices = @transform_8, window_bounds = array<i64: 16, 16>}, {pipeline_mode = #tpu.pipeline_mode<synchronous>, transform_indices = @transform_9, window_bounds = array<i64: 16, 16>}, {pipeline_mode = #tpu.pipeline_mode<synchronous>, transform_indices = @transform_10, window_bounds = array<i64: 16, 128>}, {pipeline_mode = #tpu.pipeline_mode<synchronous>, transform_indices = @transform_11, window_bounds = array<i64: 16, 128>}]} {
    %c0 = arith.constant 0 : index
    %c0_0 = arith.constant 0 : index
    %0 = vector.load %arg1[%c0, %c0_0] : memref<16x32xf32, #tpu.memory_space<vmem>>, vector<16x32xf32>
    %c0_1 = arith.constant 0 : index
    %c0_2 = arith.constant 0 : index
    %1 = vector.load %arg5[%c0_1, %c0_2] : memref<32x256xf32, #tpu.memory_space<vmem>>, vector<32x256xf32>
    %cst = arith.constant dense<0.000000e+00> : vector<16x256xf32>
    %2 = tpu.matmul %0, %1, %cst {dimension_numbers = #tpu.dot_dimension_numbers<[1], [0], [0], [1], [0, 0, 1, 1], [], []>} : vector<16x32xf32>, vector<32x256xf32>, vector<16x256xf32> -> vector<16x256xf32>
    %c0_3 = arith.constant 0 : index
    %c0_4 = arith.constant 0 : index
    %3 = vector.load %arg2[%c0_3, %c0_4] : memref<16x32xf32, #tpu.memory_space<vmem>>, vector<16x32xf32>
    %c0_5 = arith.constant 0 : index
    %c0_6 = arith.constant 0 : index
    %4 = vector.load %arg6[%c0_5, %c0_6] : memref<32x256xf32, #tpu.memory_space<vmem>>, vector<32x256xf32>
    %cst_7 = arith.constant dense<0.000000e+00> : vector<16x256xf32>
    %5 = tpu.matmul %3, %4, %cst_7 {dimension_numbers = #tpu.dot_dimension_numbers<[1], [0], [0], [1], [0, 0, 1, 1], [], []>} : vector<16x32xf32>, vector<32x256xf32>, vector<16x256xf32> -> vector<16x256xf32>
    %6 = vector.extract_strided_slice %2 {offsets = [0, 0], sizes = [16, 128], strides = [1, 1]} : vector<16x256xf32> to vector<16x128xf32>
    %7 = vector.extract_strided_slice %2 {offsets = [0, 128], sizes = [16, 128], strides = [1, 1]} : vector<16x256xf32> to vector<16x128xf32>
    %8 = vector.extract_strided_slice %5 {offsets = [0, 0], sizes = [16, 128], strides = [1, 1]} : vector<16x256xf32> to vector<16x128xf32>
    %9 = vector.extract_strided_slice %5 {offsets = [0, 128], sizes = [16, 128], strides = [1, 1]} : vector<16x256xf32> to vector<16x128xf32>
    %c0_8 = arith.constant 0 : index
    %c0_9 = arith.constant 0 : index
    %10 = vector.load %arg7[%c0_8, %c0_9] : memref<128x32xf32, #tpu.memory_space<vmem>>, vector<128x32xf32>
    %c0_10 = arith.constant 0 : index
    %c0_11 = arith.constant 0 : index
    %11 = vector.load %arg3[%c0_10, %c0_11] : memref<32x16xf32, #tpu.memory_space<vmem>>, vector<32x16xf32>
    %cst_12 = arith.constant dense<0.000000e+00> : vector<128x16xf32>
    %12 = tpu.matmul %10, %11, %cst_12 {dimension_numbers = #tpu.dot_dimension_numbers<[1], [0], [0], [1], [0, 0, 1, 1], [], []>} : vector<128x32xf32>, vector<32x16xf32>, vector<128x16xf32> -> vector<128x16xf32>
    %c0_13 = arith.constant 0 : index
    %c0_14 = arith.constant 0 : index
    %13 = vector.load %arg8[%c0_13, %c0_14] : memref<128x32xf32, #tpu.memory_space<vmem>>, vector<128x32xf32>
    %c0_15 = arith.constant 0 : index
    %c0_16 = arith.constant 0 : index
    %14 = vector.load %arg4[%c0_15, %c0_16] : memref<32x16xf32, #tpu.memory_space<vmem>>, vector<32x16xf32>
    %cst_17 = arith.constant dense<0.000000e+00> : vector<128x16xf32>
    %15 = tpu.matmul %13, %14, %cst_17 {dimension_numbers = #tpu.dot_dimension_numbers<[1], [0], [0], [1], [0, 0, 1, 1], [], []>} : vector<128x32xf32>, vector<32x16xf32>, vector<128x16xf32> -> vector<128x16xf32>
    %cst_18 = arith.constant dense<0.000000e+00> : vector<16x16xf32>
    %16 = tpu.matmul %8, %12, %cst_18 {dimension_numbers = #tpu.dot_dimension_numbers<[1], [0], [0], [1], [0, 0, 1, 1], [], []>} : vector<16x128xf32>, vector<128x16xf32>, vector<16x16xf32> -> vector<16x16xf32>
    %cst_19 = arith.constant dense<0.000000e+00> : vector<16x16xf32>
    %17 = tpu.matmul %6, %15, %cst_19 {dimension_numbers = #tpu.dot_dimension_numbers<[1], [0], [0], [1], [0, 0, 1, 1], [], []>} : vector<16x128xf32>, vector<128x16xf32>, vector<16x16xf32> -> vector<16x16xf32>
    %cst_20 = arith.constant dense<0xFF800000> : vector<16xf32>
    %18 = vector.multi_reduction <maximumf>, %16, %cst_20 [1] : vector<16x16xf32> to vector<16xf32>
    %19 = vector.shape_cast %18 : vector<16xf32> to vector<16x1xf32>
    %20 = vector.broadcast %19 : vector<16x1xf32> to vector<16x16xf32>
    %21 = arith.subf %16, %20 : vector<16x16xf32>
    %22 = math.exp %21 : vector<16x16xf32>
    %cst_21 = arith.constant dense<0xFF800000> : vector<16xf32>
    %23 = vector.multi_reduction <maximumf>, %17, %cst_21 [1] : vector<16x16xf32> to vector<16xf32>
    %24 = vector.shape_cast %23 : vector<16xf32> to vector<16x1xf32>
    %25 = vector.broadcast %24 : vector<16x1xf32> to vector<16x16xf32>
    %26 = arith.subf %17, %25 : vector<16x16xf32>
    %27 = math.exp %26 : vector<16x16xf32>
    %c0_22 = arith.constant 0 : index
    %c0_23 = arith.constant 0 : index
    %28 = vector.load %arg9[%c0_22, %c0_23] : memref<16x16xf32, #tpu.memory_space<vmem>>, vector<16x16xf32>
    tpu.vector_store %arg9[%c0_22, %c0_23], %22 {strides = array<i32>} : memref<16x16xf32, #tpu.memory_space<vmem>>, vector<16x16xf32>,
    %c0_24 = arith.constant 0 : index
    %c0_25 = arith.constant 0 : index
    %29 = vector.load %arg10[%c0_24, %c0_25] : memref<16x16xf32, #tpu.memory_space<vmem>>, vector<16x16xf32>
    tpu.vector_store %arg10[%c0_24, %c0_25], %27 {strides = array<i32>} : memref<16x16xf32, #tpu.memory_space<vmem>>, vector<16x16xf32>,
    %30 = tpu.iota {dimensions = array<i32: 1>} : vector<16x128xi32>
    %c32_i32 = arith.constant 32 : i32
    %31 = vector.broadcast %c32_i32 : i32 to vector<16x128xi32>
    %32 = arith.cmpi eq, %30, %31 : vector<16x128xi32>
    %cst_26 = arith.constant 1.000000e+00 : f32
    %33 = vector.broadcast %cst_26 : f32 to vector<16x128xf32>
    %34 = arith.select %32, %33, %7 : vector<16x128xi1>, vector<16x128xf32>
    %c32_i32_27 = arith.constant 32 : i32
    %35 = vector.broadcast %c32_i32_27 : i32 to vector<16x128xi32>
    %36 = arith.cmpi eq, %30, %35 : vector<16x128xi32>
    %cst_28 = arith.constant 1.000000e+00 : f32
    %37 = vector.broadcast %cst_28 : f32 to vector<16x128xf32>
    %38 = arith.select %36, %37, %9 : vector<16x128xi1>, vector<16x128xf32>
    %c0_29 = arith.constant 0 : index
    %c0_30 = arith.constant 0 : index
    %39 = vector.load %arg11[%c0_29, %c0_30] : memref<16x128xf32, #tpu.memory_space<vmem>>, vector<16x128xf32>
    tpu.vector_store %arg11[%c0_29, %c0_30], %34 {strides = array<i32>} : memref<16x128xf32, #tpu.memory_space<vmem>>, vector<16x128xf32>,
    %c0_31 = arith.constant 0 : index
    %c0_32 = arith.constant 0 : index
    %40 = vector.load %arg12[%c0_31, %c0_32] : memref<16x128xf32, #tpu.memory_space<vmem>>, vector<16x128xf32>
    tpu.vector_store %arg12[%c0_31, %c0_32], %38 {strides = array<i32>} : memref<16x128xf32, #tpu.memory_space<vmem>>, vector<16x128xf32>,
    return
  }
  func.func @transform_0(%arg0: i32) -> (i32, i32) {
    %c0_i32 = arith.constant 0 : i32
    %c0_i32_0 = arith.constant 0 : i32
    %c0_i32_1 = arith.constant 0 : i32
    return %c0_i32, %c0_i32_0 : i32, i32
  }
  func.func @transform_1(%arg0: i32) -> (i32, i32) {
    %c0_i32 = arith.constant 0 : i32
    %c0_i32_0 = arith.constant 0 : i32
    %c0_i32_1 = arith.constant 0 : i32
    return %c0_i32, %c0_i32_0 : i32, i32
  }
  func.func @transform_2(%arg0: i32) -> (i32, i32) {
    %c0_i32 = arith.constant 0 : i32
    %c0_i32_0 = arith.constant 0 : i32
    %c0_i32_1 = arith.constant 0 : i32
    return %c0_i32, %c0_i32_0 : i32, i32
  }
  func.func @transform_3(%arg0: i32) -> (i32, i32) {
    %c0_i32 = arith.constant 0 : i32
    %c0_i32_0 = arith.constant 0 : i32
    %c0_i32_1 = arith.constant 0 : i32
    return %c0_i32, %c0_i32_0 : i32, i32
  }
  func.func @transform_4(%arg0: i32) -> (i32, i32) {
    %c0_i32 = arith.constant 0 : i32
    %c0_i32_0 = arith.constant 0 : i32
    %c0_i32_1 = arith.constant 0 : i32
    return %c0_i32, %c0_i32_0 : i32, i32
  }
  func.func @transform_5(%arg0: i32) -> (i32, i32) {
    %c0_i32 = arith.constant 0 : i32
    %c0_i32_0 = arith.constant 0 : i32
    %c0_i32_1 = arith.constant 0 : i32
    return %c0_i32, %c0_i32_0 : i32, i32
  }
  func.func @transform_6(%arg0: i32) -> (i32, i32) {
    %c0_i32 = arith.constant 0 : i32
    %c0_i32_0 = arith.constant 0 : i32
    %c0_i32_1 = arith.constant 0 : i32
    return %c0_i32, %c0_i32_0 : i32, i32
  }
  func.func @transform_7(%arg0: i32) -> (i32, i32) {
    %c0_i32 = arith.constant 0 : i32
    %c0_i32_0 = arith.constant 0 : i32
    %c0_i32_1 = arith.constant 0 : i32
    return %c0_i32, %c0_i32_0 : i32, i32
  }
  func.func @transform_8(%arg0: i32) -> (i32, i32) {
    %c0_i32 = arith.constant 0 : i32
    %c0_i32_0 = arith.constant 0 : i32
    %c0_i32_1 = arith.constant 0 : i32
    return %c0_i32, %c0_i32_0 : i32, i32
  }
  func.func @transform_9(%arg0: i32) -> (i32, i32) {
    %c0_i32 = arith.constant 0 : i32
    %c0_i32_0 = arith.constant 0 : i32
    %c0_i32_1 = arith.constant 0 : i32
    return %c0_i32, %c0_i32_0 : i32, i32
  }
  func.func @transform_10(%arg0: i32) -> (i32, i32) {
    %c0_i32 = arith.constant 0 : i32
    %c0_i32_0 = arith.constant 0 : i32
    %c0_i32_1 = arith.constant 0 : i32
    return %c0_i32, %c0_i32_0 : i32, i32
  }
  func.func @transform_11(%arg0: i32) -> (i32, i32) {
    %c0_i32 = arith.constant 0 : i32
    %c0_i32_0 = arith.constant 0 : i32
    %c0_i32_1 = arith.constant 0 : i32
    return %c0_i32, %c0_i32_0 : i32, i32
  }
}

</mosaic_0001>

<llo_original>
// kernel: tpu_custom_call.1
$region0: #{tpu_custom_call.1}
  #allocation0 [shape = 'u32[]', space=smem, size = 0x4, offset = 0x4, fixed_abs, tag = 'smem constant byte address 0x4 - core index']
  #allocation1 [shape = 'u32[72,128]{1,0:T(1,128)}', space=vmem, size = 0x9000, scoped, tag = 'internal scratch']
  %s0 = inlined_call_operand.vmem [shape: f32[16,32], index: 0, kind: input, shape index: {}]
  %s1 = inlined_call_operand.vmem [shape: f32[16,32], index: 1, kind: input, shape index: {}]
  %s2 = inlined_call_operand.vmem [shape: f32[32,16], index: 2, kind: input, shape index: {}]
  %s3 = inlined_call_operand.vmem [shape: f32[32,16], index: 3, kind: input, shape index: {}]
  %s4 = inlined_call_operand.vmem [shape: f32[32,256], index: 4, kind: input, shape index: {}]
  %s5 = inlined_call_operand.vmem [shape: f32[32,256], index: 5, kind: input, shape index: {}]
  %s6 = inlined_call_operand.vmem [shape: f32[128,32], index: 6, kind: input, shape index: {}]
  %s7 = inlined_call_operand.vmem [shape: f32[128,32], index: 7, kind: input, shape index: {}]
  %s8 = inlined_call_operand.hbm [shape: f32[16,16], index: 8, kind: output, shape index: {0}]
  %s9 = inlined_call_operand.hbm [shape: f32[16,16], index: 9, kind: output, shape index: {1}]
  %s10 = inlined_call_operand.hbm [shape: f32[16,128], index: 10, kind: output, shape index: {2}]
  %s11 = inlined_call_operand.hbm [shape: f32[16,128], index: 11, kind: output, shape index: {3}]
  %12 = xla_tuple %s8, %s9, %s10, %s11
  %s13 = sld [smem:[#allocation0]]
  $region66: #{tpu_custom_call.1} parent=0
    _
  %s15 = ssub.s32 1, %s13
  %s16 = scalar_select 0, %s15, %s13
  $region1: #{tpu_custom_call.1} parent=0
    #allocation2 [shape = 'u8[8192]{0}', space=vmem, size = 0x2000, scoped, tag = 'output window, operand 0, single buffered']
    #allocation3 [shape = 's32[1]{0}', space=sflag, size = 0x4, scoped, tag = 'scoped memory for tpu_custom_call.1']
    #allocation4 [shape = 'u8[8192]{0}', space=vmem, size = 0x2000, scoped, tag = 'output window, operand 1, single buffered']
    #allocation5 [shape = 's32[1]{0}', space=sflag, size = 0x4, scoped, tag = 'scoped memory for tpu_custom_call.1']
    #allocation6 [shape = 'u8[8192]{0}', space=vmem, size = 0x2000, scoped, tag = 'output window, operand 2, single buffered']
    #allocation7 [shape = 'u8[8192]{0}', space=vmem, size = 0x2000, scoped, tag = 'output window, operand 3, single buffered']
    #allocation8 [shape = 's32[1]{0}', space=sflag, size = 0x4, scoped, tag = 'scoped memory for tpu_custom_call.1']
    %17 = vsyncpa [#allocation3], 0
    %18 = vsyncpa [#allocation5], 0
    %19 = vsyncpa [#allocation8], 0
    // Predicated region
    $region2: #{tpu_custom_call.1} parent=1 // pred_check
      _
    $region3: #{tpu_custom_call.1} parent=1 // pred_check_branch
      %21 = sbr.rel (0) target = $region5
    $region4: #{tpu_custom_call.1} parent=1 // pred_region
      _
    $region5: #{tpu_custom_call.1} parent=1 // pred_fallthru
      _
    // Predicated region
    $region6: #{tpu_custom_call.1} parent=1 // pred_check
      _
    $region7: #{tpu_custom_call.1} parent=1 // pred_check_branch
      %23 = sbr.rel (0) target = $region9
    $region8: #{tpu_custom_call.1} parent=1 // pred_region
      _
    $region9: #{tpu_custom_call.1} parent=1 // pred_fallthru
      _
    // Predicated region
    $region10: #{tpu_custom_call.1} parent=1 // pred_check
      _
    $region11: #{tpu_custom_call.1} parent=1 // pred_check_branch
      %25 = sbr.rel (0) target = $region13
    $region12: #{tpu_custom_call.1} parent=1 // pred_region
      _
    $region13: #{tpu_custom_call.1} parent=1 // pred_fallthru
      _
    // Predicated region
    $region14: #{tpu_custom_call.1} parent=1 // pred_check
      _
    $region15: #{tpu_custom_call.1} parent=1 // pred_check_branch
      %27 = sbr.rel (0) target = $region17
    $region16: #{tpu_custom_call.1} parent=1 // pred_region
      _
    $region17: #{tpu_custom_call.1} parent=1 // pred_fallthru
      _
    // Predicated region
    $region18: #{tpu_custom_call.1} parent=1 // pred_check
      _
    $region19: #{tpu_custom_call.1} parent=1 // pred_check_branch
      %29 = sbr.rel (0) target = $region21
    $region20: #{tpu_custom_call.1} parent=1 // pred_region
      _
    $region21: #{tpu_custom_call.1} parent=1 // pred_fallthru
      _
    // Predicated region
    $region22: #{tpu_custom_call.1} parent=1 // pred_check
      _
    $region23: #{tpu_custom_call.1} parent=1 // pred_check_branch
      %31 = sbr.rel (0) target = $region25
    $region24: #{tpu_custom_call.1} parent=1 // pred_region
      _
    $region25: #{tpu_custom_call.1} parent=1 // pred_fallthru
      _
    // Predicated region
    $region26: #{tpu_custom_call.1} parent=1 // pred_check
      _
    $region27: #{tpu_custom_call.1} parent=1 // pred_check_branch
      %33 = sbr.rel (0) target = $region29
    $region28: #{tpu_custom_call.1} parent=1 // pred_region
      _
    $region29: #{tpu_custom_call.1} parent=1 // pred_fallthru
      _
    // Predicated region
    $region30: #{tpu_custom_call.1} parent=1 // pred_check
      _
    $region31: #{tpu_custom_call.1} parent=1 // pred_check_branch
      %35 = sbr.rel (0) target = $region33
    $region32: #{tpu_custom_call.1} parent=1 // pred_region
      _
    $region33: #{tpu_custom_call.1} parent=1 // pred_fallthru
      _
    %v36 = vld [vmem:[%s0] sm:$0xff]
    %v37 = vld [vmem:[%s0 + $0x8] sm:$0xff]
    %v38 = vld [vmem:[%s4] sm:$0xff]
    %v39 = vld [vmem:[%s4 + $0x8] sm:$0xff]
    %v40 = vld [vmem:[%s4 + $0x10] sm:$0xff]
    %v41 = vld [vmem:[%s4 + $0x18] sm:$0xff]
    %v42 = vld [vmem:[%s4 + $0x20] sm:$0xff]
    %v43 = vld [vmem:[%s4 + $0x28] sm:$0xff]
    %v44 = vld [vmem:[%s4 + $0x30] sm:$0xff]
    %v45 = vld [vmem:[%s4 + $0x38] sm:$0xff]
    %vm46 = vcmask 261120
    %v48 = vsel %vm46, %v36, 0
    %v51 = vsel %vm46, %v37, 0
    %53 = vmatpush.msra.mxu0 0.0
    %54 = vmatpush.msra.mxu0 0.0
    %55 = vmatpush.msra.mxu0 0.0
    %56 = vmatpush.msra.mxu0 0.0
    %57 = vmatpush.msra.mxu0 0.0
    %58 = vmatpush.msra.mxu0 0.0
    %59 = vmatpush.msra.mxu0 0.0
    %60 = vmatpush.msra.mxu0 0.0
    %61 = vmatpush.msra.mxu0 0.0
    %62 = vmatpush.msra.mxu0 0.0
    %63 = vmatpush.msra.mxu0 0.0
    %64 = vmatpush.msra.mxu0 0.0
    %65 = vmatpush.msra.mxu0 %v44
    %66 = vmatpush.msra.mxu0 %v42
    %67 = vmatpush.msra.mxu0 %v40
    %68 = vmatpush.msra.mxu0 %v38
    %69 = vmatmul.f32.gmra.mxu0 %v48
    %v70 = vpop.f32.mrf.mxu0
    %v71 = vadd.f32 0.0, %v70
    %72 = vmatmul.f32.gmra.mxu0 %v51
    %v73 = vpop.f32.mrf.mxu0
    %v74 = vadd.f32 0.0, %v73
    %75 = vdwg.mxu0
    %76 = vmatpush.msra.mxu0 0.0
    %77 = vmatpush.msra.mxu0 0.0
    %78 = vmatpush.msra.mxu0 0.0
    %79 = vmatpush.msra.mxu0 0.0
    %80 = vmatpush.msra.mxu0 0.0
    %81 = vmatpush.msra.mxu0 0.0
    %82 = vmatpush.msra.mxu0 0.0
    %83 = vmatpush.msra.mxu0 0.0
    %84 = vmatpush.msra.mxu0 0.0
    %85 = vmatpush.msra.mxu0 0.0
    %86 = vmatpush.msra.mxu0 0.0
    %87 = vmatpush.msra.mxu0 0.0
    %88 = vmatpush.msra.mxu0 %v45
    %89 = vmatpush.msra.mxu0 %v43
    %90 = vmatpush.msra.mxu0 %v41
    %91 = vmatpush.msra.mxu0 %v39
    %92 = vmatmul.f32.gmra.mxu0 %v48
    %v93 = vpop.f32.mrf.mxu0
    %v94 = vadd.f32 0.0, %v93
    %95 = vmatmul.f32.gmra.mxu0 %v51
    %v96 = vpop.f32.mrf.mxu0
    %v97 = vadd.f32 0.0, %v96
    %98 = vdwg.mxu0
    %v99 = vld [vmem:[%s1] sm:$0xff]
    %v100 = vld [vmem:[%s1 + $0x8] sm:$0xff]
    %v101 = vld [vmem:[%s5] sm:$0xff]
    %v102 = vld [vmem:[%s5 + $0x8] sm:$0xff]
    %v103 = vld [vmem:[%s5 + $0x10] sm:$0xff]
    %v104 = vld [vmem:[%s5 + $0x18] sm:$0xff]
    %v105 = vld [vmem:[%s5 + $0x20] sm:$0xff]
    %v106 = vld [vmem:[%s5 + $0x28] sm:$0xff]
    %v107 = vld [vmem:[%s5 + $0x30] sm:$0xff]
    %v108 = vld [vmem:[%s5 + $0x38] sm:$0xff]
    %v110 = vsel %vm46, %v99, 0
    %v113 = vsel %vm46, %v100, 0
    %115 = vmatpush.msra.mxu0 0.0
    %116 = vmatpush.msra.mxu0 0.0
    %117 = vmatpush.msra.mxu0 0.0
    %118 = vmatpush.msra.mxu0 0.0
    %119 = vmatpush.msra.mxu0 0.0
    %120 = vmatpush.msra.mxu0 0.0
    %121 = vmatpush.msra.mxu0 0.0
    %122 = vmatpush.msra.mxu0 0.0
    %123 = vmatpush.msra.mxu0 0.0
    %124 = vmatpush.msra.mxu0 0.0
    %125 = vmatpush.msra.mxu0 0.0
    %126 = vmatpush.msra.mxu0 0.0
    %127 = vmatpush.msra.mxu0 %v107
    %128 = vmatpush.msra.mxu0 %v105
    %129 = vmatpush.msra.mxu0 %v103
    %130 = vmatpush.msra.mxu0 %v101
    %131 = vmatmul.f32.gmra.mxu0 %v110
    %v132 = vpop.f32.mrf.mxu0
    %v133 = vadd.f32 0.0, %v132
    %134 = vmatmul.f32.gmra.mxu0 %v113
    %v135 = vpop.f32.mrf.mxu0
    %v136 = vadd.f32 0.0, %v135
    %137 = vdwg.mxu0
    %138 = vmatpush.msra.mxu0 0.0
    %139 = vmatpush.msra.mxu0 0.0
    %140 = vmatpush.msra.mxu0 0.0
    %141 = vmatpush.msra.mxu0 0.0
    %142 = vmatpush.msra.mxu0 0.0
    %143 = vmatpush.msra.mxu0 0.0
    %144 = vmatpush.msra.mxu0 0.0
    %145 = vmatpush.msra.mxu0 0.0
    %146 = vmatpush.msra.mxu0 0.0
    %147 = vmatpush.msra.mxu0 0.0
    %148 = vmatpush.msra.mxu0 0.0
    %149 = vmatpush.msra.mxu0 0.0
    %150 = vmatpush.msra.mxu0 %v108
    %151 = vmatpush.msra.mxu0 %v106
    %152 = vmatpush.msra.mxu0 %v104
    %153 = vmatpush.msra.mxu0 %v102
    %154 = vmatmul.f32.gmra.mxu0 %v110
    %v155 = vpop.f32.mrf.mxu0
    %v156 = vadd.f32 0.0, %v155
    %157 = vmatmul.f32.gmra.mxu0 %v113
    %v158 = vpop.f32.mrf.mxu0
    %v159 = vadd.f32 0.0, %v158
    %160 = vdwg.mxu0
    %v161 = vld [vmem:[%s6] sm:$0xff]
    %v162 = vld [vmem:[%s6 + $0x8] sm:$0xff]
    %v163 = vld [vmem:[%s6 + $0x10] sm:$0xff]
    %v164 = vld [vmem:[%s6 + $0x18] sm:$0xff]
    %v165 = vld [vmem:[%s6 + $0x20] sm:$0xff]
    %v166 = vld [vmem:[%s6 + $0x28] sm:$0xff]
    %v167 = vld [vmem:[%s6 + $0x30] sm:$0xff]
    %v168 = vld [vmem:[%s6 + $0x38] sm:$0xff]
    %v169 = vld [vmem:[%s6 + $0x40] sm:$0xff]
    %v170 = vld [vmem:[%s6 + $0x48] sm:$0xff]
    %v171 = vld [vmem:[%s6 + $0x50] sm:$0xff]
    %v172 = vld [vmem:[%s6 + $0x58] sm:$0xff]
    %v173 = vld [vmem:[%s6 + $0x60] sm:$0xff]
    %v174 = vld [vmem:[%s6 + $0x68] sm:$0xff]
    %v175 = vld [vmem:[%s6 + $0x70] sm:$0xff]
    %v176 = vld [vmem:[%s6 + $0x78] sm:$0xff]
    %v177 = vld [vmem:[%s2] sm:$0xff]
    %v178 = vld [vmem:[%s2 + $0x8] sm:$0xff]
    %v179 = vld [vmem:[%s2 + $0x10] sm:$0xff]
    %v180 = vld [vmem:[%s2 + $0x18] sm:$0xff]
    %v182 = vsel %vm46, %v161, 0
    %v185 = vsel %vm46, %v162, 0
    %v188 = vsel %vm46, %v163, 0
    %v191 = vsel %vm46, %v164, 0
    %v194 = vsel %vm46, %v165, 0
    %v197 = vsel %vm46, %v166, 0
    %v200 = vsel %vm46, %v167, 0
    %v203 = vsel %vm46, %v168, 0
    %v206 = vsel %vm46, %v169, 0
    %v209 = vsel %vm46, %v170, 0
    %v212 = vsel %vm46, %v171, 0
    %v215 = vsel %vm46, %v172, 0
    %v218 = vsel %vm46, %v173, 0
    %v221 = vsel %vm46, %v174, 0
    %v224 = vsel %vm46, %v175, 0
    %v227 = vsel %vm46, %v176, 0
    %229 = vmatpush.msra.mxu0 0.0
    %230 = vmatpush.msra.mxu0 0.0
    %231 = vmatpush.msra.mxu0 0.0
    %232 = vmatpush.msra.mxu0 0.0
    %233 = vmatpush.msra.mxu0 0.0
    %234 = vmatpush.msra.mxu0 0.0
    %235 = vmatpush.msra.mxu0 0.0
    %236 = vmatpush.msra.mxu0 0.0
    %237 = vmatpush.msra.mxu0 0.0
    %238 = vmatpush.msra.mxu0 0.0
    %239 = vmatpush.msra.mxu0 0.0
    %240 = vmatpush.msra.mxu0 0.0
    %241 = vmatpush.msra.mxu0 %v180
    %242 = vmatpush.msra.mxu0 %v179
    %243 = vmatpush.msra.mxu0 %v178
    %244 = vmatpush.msra.mxu0 %v177
    %245 = vmatmul.f32.gmra.mxu0 %v182
    %v246 = vpop.f32.mrf.mxu0
    %v247 = vadd.f32 0.0, %v246
    %248 = vmatmul.f32.gmra.mxu0 %v185
    %v249 = vpop.f32.mrf.mxu0
    %v250 = vadd.f32 0.0, %v249
    %251 = vmatmul.f32.gmra.mxu0 %v188
    %v252 = vpop.f32.mrf.mxu0
    %v253 = vadd.f32 0.0, %v252
    %254 = vmatmul.f32.gmra.mxu0 %v191
    %v255 = vpop.f32.mrf.mxu0
    %v256 = vadd.f32 0.0, %v255
    %257 = vmatmul.f32.gmra.mxu0 %v194
    %v258 = vpop.f32.mrf.mxu0
    %v259 = vadd.f32 0.0, %v258
    %260 = vmatmul.f32.gmra.mxu0 %v197
    %v261 = vpop.f32.mrf.mxu0
    %v262 = vadd.f32 0.0, %v261
    %263 = vmatmul.f32.gmra.mxu0 %v200
    %v264 = vpop.f32.mrf.mxu0
    %v265 = vadd.f32 0.0, %v264
    %266 = vmatmul.f32.gmra.mxu0 %v203
    %v267 = vpop.f32.mrf.mxu0
    %v268 = vadd.f32 0.0, %v267
    %269 = vmatmul.f32.gmra.mxu0 %v206
    %v270 = vpop.f32.mrf.mxu0
    %v271 = vadd.f32 0.0, %v270
    %272 = vmatmul.f32.gmra.mxu0 %v209
    %v273 = vpop.f32.mrf.mxu0
    %v274 = vadd.f32 0.0, %v273
    %275 = vmatmul.f32.gmra.mxu0 %v212
    %v276 = vpop.f32.mrf.mxu0
    %v277 = vadd.f32 0.0, %v276
    %278 = vmatmul.f32.gmra.mxu0 %v215
    %v279 = vpop.f32.mrf.mxu0
    %v280 = vadd.f32 0.0, %v279
    %281 = vmatmul.f32.gmra.mxu0 %v218
    %v282 = vpop.f32.mrf.mxu0
    %v283 = vadd.f32 0.0, %v282
    %284 = vmatmul.f32.gmra.mxu0 %v221
    %v285 = vpop.f32.mrf.mxu0
    %v286 = vadd.f32 0.0, %v285
    %287 = vmatmul.f32.gmra.mxu0 %v224
    %v288 = vpop.f32.mrf.mxu0
    %v289 = vadd.f32 0.0, %v288
    %290 = vmatmul.f32.gmra.mxu0 %v227
    %v291 = vpop.f32.mrf.mxu0
    %v292 = vadd.f32 0.0, %v291
    %293 = vdwg.mxu0
    %v294 = vld [vmem:[%s7] sm:$0xff]
    %v295 = vld [vmem:[%s7 + $0x8] sm:$0xff]
    %v296 = vld [vmem:[%s7 + $0x10] sm:$0xff]
    %v297 = vld [vmem:[%s7 + $0x18] sm:$0xff]
    %v298 = vld [vmem:[%s7 + $0x20] sm:$0xff]
    %v299 = vld [vmem:[%s7 + $0x28] sm:$0xff]
    %v300 = vld [vmem:[%s7 + $0x30] sm:$0xff]
    %v301 = vld [vmem:[%s7 + $0x38] sm:$0xff]
    %v302 = vld [vmem:[%s7 + $0x40] sm:$0xff]
    %v303 = vld [vmem:[%s7 + $0x48] sm:$0xff]
    %v304 = vld [vmem:[%s7 + $0x50] sm:$0xff]
    %v305 = vld [vmem:[%s7 + $0x58] sm:$0xff]
    %v306 = vld [vmem:[%s7 + $0x60] sm:$0xff]
    %v307 = vld [vmem:[%s7 + $0x68] sm:$0xff]
    %v308 = vld [vmem:[%s7 + $0x70] sm:$0xff]
    %v309 = vld [vmem:[%s7 + $0x78] sm:$0xff]
    %v310 = vld [vmem:[%s3] sm:$0xff]
    %v311 = vld [vmem:[%s3 + $0x8] sm:$0xff]
    %v312 = vld [vmem:[%s3 + $0x10] sm:$0xff]
    %v313 = vld [vmem:[%s3 + $0x18] sm:$0xff]
    %v315 = vsel %vm46, %v294, 0
    %v318 = vsel %vm46, %v295, 0
    %v321 = vsel %vm46, %v296, 0
    %v324 = vsel %vm46, %v297, 0
    %v327 = vsel %vm46, %v298, 0
    %v330 = vsel %vm46, %v299, 0
    %v333 = vsel %vm46, %v300, 0
    %v336 = vsel %vm46, %v301, 0
    %v339 = vsel %vm46, %v302, 0
    %v342 = vsel %vm46, %v303, 0
    %v345 = vsel %vm46, %v304, 0
    %v348 = vsel %vm46, %v305, 0
    %v351 = vsel %vm46, %v306, 0
    %v354 = vsel %vm46, %v307, 0
    %v357 = vsel %vm46, %v308, 0
    %v360 = vsel %vm46, %v309, 0
    %362 = vmatpush.msra.mxu0 0.0
    %363 = vmatpush.msra.mxu0 0.0
    %364 = vmatpush.msra.mxu0 0.0
    %365 = vmatpush.msra.mxu0 0.0
    %366 = vmatpush.msra.mxu0 0.0
    %367 = vmatpush.msra.mxu0 0.0
    %368 = vmatpush.msra.mxu0 0.0
    %369 = vmatpush.msra.mxu0 0.0
    %370 = vmatpush.msra.mxu0 0.0
    %371 = vmatpush.msra.mxu0 0.0
    %372 = vmatpush.msra.mxu0 0.0
    %373 = vmatpush.msra.mxu0 0.0
    %374 = vmatpush.msra.mxu0 %v313
    %375 = vmatpush.msra.mxu0 %v312
    %376 = vmatpush.msra.mxu0 %v311
    %377 = vmatpush.msra.mxu0 %v310
    %378 = vmatmul.f32.gmra.mxu0 %v315
    %v379 = vpop.f32.mrf.mxu0
    %v380 = vadd.f32 0.0, %v379
    %381 = vmatmul.f32.gmra.mxu0 %v318
    %v382 = vpop.f32.mrf.mxu0
    %v383 = vadd.f32 0.0, %v382
    %384 = vmatmul.f32.gmra.mxu0 %v321
    %v385 = vpop.f32.mrf.mxu0
    %v386 = vadd.f32 0.0, %v385
    %387 = vmatmul.f32.gmra.mxu0 %v324
    %v388 = vpop.f32.mrf.mxu0
    %v389 = vadd.f32 0.0, %v388
    %390 = vmatmul.f32.gmra.mxu0 %v327
    %v391 = vpop.f32.mrf.mxu0
    %v392 = vadd.f32 0.0, %v391
    %393 = vmatmul.f32.gmra.mxu0 %v330
    %v394 = vpop.f32.mrf.mxu0
    %v395 = vadd.f32 0.0, %v394
    %396 = vmatmul.f32.gmra.mxu0 %v333
    %v397 = vpop.f32.mrf.mxu0
    %v398 = vadd.f32 0.0, %v397
    %399 = vmatmul.f32.gmra.mxu0 %v336
    %v400 = vpop.f32.mrf.mxu0
    %v401 = vadd.f32 0.0, %v400
    %402 = vmatmul.f32.gmra.mxu0 %v339
    %v403 = vpop.f32.mrf.mxu0
    %v404 = vadd.f32 0.0, %v403
    %405 = vmatmul.f32.gmra.mxu0 %v342
    %v406 = vpop.f32.mrf.mxu0
    %v407 = vadd.f32 0.0, %v406
    %408 = vmatmul.f32.gmra.mxu0 %v345
    %v409 = vpop.f32.mrf.mxu0
    %v410 = vadd.f32 0.0, %v409
    %411 = vmatmul.f32.gmra.mxu0 %v348
    %v412 = vpop.f32.mrf.mxu0
    %v413 = vadd.f32 0.0, %v412
    %414 = vmatmul.f32.gmra.mxu0 %v351
    %v415 = vpop.f32.mrf.mxu0
    %v416 = vadd.f32 0.0, %v415
    %417 = vmatmul.f32.gmra.mxu0 %v354
    %v418 = vpop.f32.mrf.mxu0
    %v419 = vadd.f32 0.0, %v418
    %420 = vmatmul.f32.gmra.mxu0 %v357
    %v421 = vpop.f32.mrf.mxu0
    %v422 = vadd.f32 0.0, %v421
    %423 = vmatmul.f32.gmra.mxu0 %v360
    %v424 = vpop.f32.mrf.mxu0
    %v425 = vadd.f32 0.0, %v424
    %426 = vdwg.mxu0
    %427 = vmatpush.msra.mxu0 %v292
    %428 = vmatpush.msra.mxu0 %v289
    %429 = vmatpush.msra.mxu0 %v286
    %430 = vmatpush.msra.mxu0 %v283
    %431 = vmatpush.msra.mxu0 %v280
    %432 = vmatpush.msra.mxu0 %v277
    %433 = vmatpush.msra.mxu0 %v274
    %434 = vmatpush.msra.mxu0 %v271
    %435 = vmatpush.msra.mxu0 %v268
    %436 = vmatpush.msra.mxu0 %v265
    %437 = vmatpush.msra.mxu0 %v262
    %438 = vmatpush.msra.mxu0 %v259
    %439 = vmatpush.msra.mxu0 %v256
    %440 = vmatpush.msra.mxu0 %v253
    %441 = vmatpush.msra.mxu0 %v250
    %442 = vmatpush.msra.mxu0 %v247
    %443 = vmatmul.f32.gmra.mxu0 %v133
    %v444 = vpop.f32.mrf.mxu0
    %v445 = vadd.f32 0.0, %v444
    %446 = vmatmul.f32.gmra.mxu0 %v136
    %v447 = vpop.f32.mrf.mxu0
    %v448 = vadd.f32 0.0, %v447
    %449 = vdwg.mxu0
    %450 = vmatpush.msra.mxu0 %v425
    %451 = vmatpush.msra.mxu0 %v422
    %452 = vmatpush.msra.mxu0 %v419
    %453 = vmatpush.msra.mxu0 %v416
    %454 = vmatpush.msra.mxu0 %v413
    %455 = vmatpush.msra.mxu0 %v410
    %456 = vmatpush.msra.mxu0 %v407
    %457 = vmatpush.msra.mxu0 %v404
    %458 = vmatpush.msra.mxu0 %v401
    %459 = vmatpush.msra.mxu0 %v398
    %460 = vmatpush.msra.mxu0 %v395
    %461 = vmatpush.msra.mxu0 %v392
    %462 = vmatpush.msra.mxu0 %v389
    %463 = vmatpush.msra.mxu0 %v386
    %464 = vmatpush.msra.mxu0 %v383
    %465 = vmatpush.msra.mxu0 %v380
    %466 = vmatmul.f32.gmra.mxu0 %v71
    %v467 = vpop.f32.mrf.mxu0
    %v468 = vadd.f32 0.0, %v467
    %469 = vmatmul.f32.gmra.mxu0 %v74
    %v470 = vpop.f32.mrf.mxu0
    %v471 = vadd.f32 0.0, %v470
    %472 = vdwg.mxu0
    %vm473 = vcmask 130048
    %v474 = vsel %vm473, %v445, -inf
    %475 = vmax.xlane.f32.xlu0 %v474
    %v476 = vpop.xlane.xlu0 %475
    %v477 = vsel %vm473, %v448, -inf
    %478 = vmax.xlane.f32.xlu0 %v477
    %v479 = vpop.xlane.xlu0 %478
    %v480 = vsub.f32 %v445, %v476
    %v481 = vsub.f32 %v448, %v479
    %v482 = vmul.f32 %v480, 1.442695
    %v483 = vpow.pop %v482
    %v484 = vmul.f32 %v481, 1.442695
    %v485 = vpow.pop %v484
    %v486 = vsel %vm473, %v468, -inf
    %487 = vmax.xlane.f32.xlu0 %v486
    %v488 = vpop.xlane.xlu0 %487
    %v489 = vsel %vm473, %v471, -inf
    %490 = vmax.xlane.f32.xlu0 %v489
    %v491 = vpop.xlane.xlu0 %490
    %v492 = vsub.f32 %v468, %v488
    %v493 = vsub.f32 %v471, %v491
    %v494 = vmul.f32 %v492, 1.442695
    %v495 = vpow.pop %v494
    %v496 = vmul.f32 %v493, 1.442695
    %v497 = vpow.pop %v496
    %498 = vst.msk [vmem:[#allocation2] sm:$0xff] %vm473, %v483
    %499 = vst.msk [vmem:[#allocation2 + $0x8] sm:$0xff] %vm473, %v485
    %500 = vst.msk [vmem:[#allocation4] sm:$0xff] %vm473, %v495
    %501 = vst.msk [vmem:[#allocation4 + $0x8] sm:$0xff] %vm473, %v497
    %v502 = vlaneseq
    %v503 = vand.u32 %v502, 127
    %vm504 = vcmp.eq.s32.totalorder %v503, 32
    %v505 = vsel %vm504, 1.0, %v94
    %v506 = vsel %vm504, 1.0, %v97
    %v507 = vsel %vm504, 1.0, %v156
    %v508 = vsel %vm504, 1.0, %v159
    %509 = vst [vmem:[#allocation6] sm:$0xff] %v505
    %510 = vst [vmem:[#allocation6 + $0x8] sm:$0xff] %v506
    %511 = vst [vmem:[#allocation7] sm:$0xff] %v507
    %512 = vst [vmem:[#allocation7 + $0x8] sm:$0xff] %v508
    // Predicated region
    $region34: #{tpu_custom_call.1} parent=1 // pred_check
      _
    $region35: #{tpu_custom_call.1} parent=1 // pred_check_branch
      %514 = sbr.rel (0) target = $region37
    $region36: #{tpu_custom_call.1} parent=1 // pred_region
      %516 = vsyncadd [#allocation3], 0
      %s517 = sshll.u32 [#allocation2], 4
      %s518 = int_to_ptr.vmem [resolvable:$true] %s517
      %s519 = sshll.u32 %s8, 4
      %s520 = int_to_ptr.hbm [resolvable:$true] %s519
      %525 = dma.vmem_to_hbm [thread:$0]  %s518, 256, %s520, [#allocation3], 128, 128, 8
    $region37: #{tpu_custom_call.1} parent=1 // pred_fallthru
      _
    // Predicated region
    $region38: #{tpu_custom_call.1} parent=1 // pred_check
      _
    $region39: #{tpu_custom_call.1} parent=1 // pred_check_branch
      %527 = sbr.rel (0) target = $region41
    $region40: #{tpu_custom_call.1} parent=1 // pred_region
      %529 = vsyncadd [#allocation5], 0
      %s530 = sshll.u32 [#allocation4], 4
      %s531 = int_to_ptr.vmem [resolvable:$true] %s530
      %s532 = sshll.u32 %s9, 4
      %s533 = int_to_ptr.hbm [resolvable:$true] %s532
      %538 = dma.vmem_to_hbm [thread:$0]  %s531, 256, %s533, [#allocation5], 128, 128, 8
    $region41: #{tpu_custom_call.1} parent=1 // pred_fallthru
      _
    // Predicated region
    $region42: #{tpu_custom_call.1} parent=1 // pred_check
      _
    $region43: #{tpu_custom_call.1} parent=1 // pred_check_branch
      %540 = sbr.rel (0) target = $region45
    $region44: #{tpu_custom_call.1} parent=1 // pred_region
      %542 = vsyncadd [#allocation5], 0
      %s543 = sshll.u32 [#allocation6], 4
      %s544 = int_to_ptr.vmem [resolvable:$true] %s543
      %s545 = sshll.u32 %s10, 4
      %s546 = int_to_ptr.hbm [resolvable:$true] %s545
      %551 = dma.vmem_to_hbm [thread:$0]  %s544, 256, %s546, [#allocation5], 128, 128, 8
    $region45: #{tpu_custom_call.1} parent=1 // pred_fallthru
      _
    // Predicated region
    $region46: #{tpu_custom_call.1} parent=1 // pred_check
      _
    $region47: #{tpu_custom_call.1} parent=1 // pred_check_branch
      %553 = sbr.rel (0) target = $region49
    $region48: #{tpu_custom_call.1} parent=1 // pred_region
      %555 = vsyncadd [#allocation8], 0
      %s556 = sshll.u32 [#allocation7], 4
      %s557 = int_to_ptr.vmem [resolvable:$true] %s556
      %s558 = sshll.u32 %s11, 4
      %s559 = int_to_ptr.hbm [resolvable:$true] %s558
      %564 = dma.vmem_to_hbm [thread:$0]  %s557, 256, %s559, [#allocation8], 128, 128, 8
    $region49: #{tpu_custom_call.1} parent=1 // pred_fallthru
      _
    // Predicated region
    $region50: #{tpu_custom_call.1} parent=1 // pred_check
      _
    $region51: #{tpu_custom_call.1} parent=1 // pred_check_branch
      %566 = sbr.rel (0) target = $region53
    $region52: #{tpu_custom_call.1} parent=1 // pred_region
      %568 = dma.done [#allocation3], 256
    $region53: #{tpu_custom_call.1} parent=1 // pred_fallthru
      _
    // Predicated region
    $region54: #{tpu_custom_call.1} parent=1 // pred_check
      _
    $region55: #{tpu_custom_call.1} parent=1 // pred_check_branch
      %570 = sbr.rel (0) target = $region57
    $region56: #{tpu_custom_call.1} parent=1 // pred_region
      %572 = dma.done [#allocation5], 256
    $region57: #{tpu_custom_call.1} parent=1 // pred_fallthru
      _
    // Predicated region
    $region58: #{tpu_custom_call.1} parent=1 // pred_check
      _
    $region59: #{tpu_custom_call.1} parent=1 // pred_check_branch
      %574 = sbr.rel (0) target = $region61
    $region60: #{tpu_custom_call.1} parent=1 // pred_region
      %576 = dma.done [#allocation5], 256
    $region61: #{tpu_custom_call.1} parent=1 // pred_fallthru
      _
    // Predicated region
    $region62: #{tpu_custom_call.1} parent=1 // pred_check
      _
    $region63: #{tpu_custom_call.1} parent=1 // pred_check_branch
      %578 = sbr.rel (0) target = $region65
    $region64: #{tpu_custom_call.1} parent=1 // pred_region
      %580 = dma.done [#allocation8], 256
    $region65: #{tpu_custom_call.1} parent=1 // pred_fallthru
      _
    %581 = vsyncpa [#allocation3], 1
    %582 = vsyncpa [#allocation5], 1
    %583 = vsyncpa [#allocation8], 1

</llo_original>
